<compile_context>
chip_gen: v7x
topology: tpu7x:2x2x1
jax: 0.10.0
libtpu: 0.0.40
codegen_flags: <defaults>
</compile_context>

<pallas_src>
import functools

import jax
import jax.numpy as jnp
from jax.experimental import pallas as pl
from jax.experimental.pallas import tpu as pltpu


def _round_up(x, m):
    return ((x + m - 1) // m) * m


# ----------------------------------------------------------------------------
# Linear (pre-/post-quantizer) : tiled MXU matmul + bias
# ----------------------------------------------------------------------------
def _linear_kernel_acc(x_ref, w_ref, b_ref, o_ref, acc_ref):
    """K is split across grid axis 2: f32 VMEM accumulator + init/finalize."""
    @pl.when(pl.program_id(2) == 0)
    def _():
        acc_ref[...] = jnp.zeros_like(acc_ref)

    acc_ref[...] += jnp.dot(x_ref[...], w_ref[...],
                            preferred_element_type=jnp.float32)

    @pl.when(pl.program_id(2) == pl.num_programs(2) - 1)
    def _():
        o_ref[...] = (acc_ref[...] + b_ref[...]).astype(o_ref.dtype)


def _linear_kernel_single(x_ref, w_ref, b_ref, o_ref):
    """K fits in a single tile: write the output directly, no scratch."""
    o_ref[...] = (jnp.dot(x_ref[...], w_ref[...],
                          preferred_element_type=jnp.float32)
                  + b_ref[...]).astype(o_ref.dtype)


def linear_pallas(x, w, b, *, tm=512, tn=512, tk=512,
                  compute_dtype=jnp.bfloat16,
                  vmem_limit_bytes=48 * 1024 * 1024):
    """(M, K) @ (K, N) + (1, N) -> f32 (M, N), BlockSpec-pipelined on the MXU.

    Operands are pre-cast to `compute_dtype` (bf16 feeds the MXU at native rate
    on v5e/v6e/v7x; accumulation is always f32) and zero-padded to tile multiples
    in HBM; the result is sliced back to (M, N).
    """
    M, K = x.shape
    Kw, N = w.shape
    assert K == Kw and b.shape == (1, N)

    tm = min(tm, _round_up(M, 8))
    tn = min(tn, _round_up(N, 128))
    tk = min(tk, _round_up(K, 128))
    Mp, Np, Kp = _round_up(M, tm), _round_up(N, tn), _round_up(K, tk)

    xc = x.astype(compute_dtype)
    wc = w.astype(compute_dtype)
    bc = b.astype(jnp.float32)
    if (Mp, Kp) != (M, K):
        xc = jnp.pad(xc, ((0, Mp - M), (0, Kp - K)))
    if (Kp, Np) != (K, N):
        wc = jnp.pad(wc, ((0, Kp - K), (0, Np - N)))
    if Np != N:
        bc = jnp.pad(bc, ((0, 0), (0, Np - N)))

    gm, gn, gk = Mp // tm, Np // tn, Kp // tk
    cost = pl.CostEstimate(
        flops=int(2 * Mp * Np * Kp),
        transcendentals=0,
        bytes_accessed=int(xc.dtype.itemsize * Mp * Kp * gn
                           + wc.dtype.itemsize * Kp * Np * gm
                           + 4 * (Mp * Np + Np)),
    )

    if gk == 1:
        out = pl.pallas_call(
            _linear_kernel_single,
            out_shape=jax.ShapeDtypeStruct((Mp, Np), jnp.float32),
            grid_spec=pltpu.PrefetchScalarGridSpec(
                num_scalar_prefetch=0,
                grid=(gm, gn),
                in_specs=[
                    pl.BlockSpec((tm, tk), lambda i, j: (i, 0)),
                    pl.BlockSpec((tk, tn), lambda i, j: (0, j)),
                    pl.BlockSpec((1, tn), lambda i, j: (0, j)),
                ],
                out_specs=pl.BlockSpec((tm, tn), lambda i, j: (i, j)),
            ),
            compiler_params=pltpu.CompilerParams(
                dimension_semantics=("parallel", "parallel"),
                vmem_limit_bytes=vmem_limit_bytes,
            ),
            cost_estimate=cost,
        )(xc, wc, bc)
    else:
        out = pl.pallas_call(
            _linear_kernel_acc,
            out_shape=jax.ShapeDtypeStruct((Mp, Np), jnp.float32),
            grid_spec=pltpu.PrefetchScalarGridSpec(
                num_scalar_prefetch=0,
                grid=(gm, gn, gk),
                in_specs=[
                    pl.BlockSpec((tm, tk), lambda i, j, k: (i, k)),
                    pl.BlockSpec((tk, tn), lambda i, j, k: (k, j)),
                    pl.BlockSpec((1, tn), lambda i, j, k: (0, j)),
                ],
                out_specs=pl.BlockSpec((tm, tn), lambda i, j, k: (i, j)),
                scratch_shapes=[pltpu.VMEM((tm, tn), jnp.float32)],
            ),
            compiler_params=pltpu.CompilerParams(
                dimension_semantics=("parallel", "parallel", "arbitrary"),
                vmem_limit_bytes=vmem_limit_bytes,
            ),
            cost_estimate=cost,
        )(xc, wc, bc)

    if (Mp, Np) != (M, N):
        out = out[:M, :N]
    return out


def linear(x, w, b, *, compute_dtype=jnp.bfloat16, min_rows_for_pallas=128, **kw):
    """Routes to the Pallas kernel only when M is large enough to occupy the MXU;
    tiny-row matmuls (e.g. B=2) are pure pallas_call/DMA overhead vs XLA."""
    M, _ = x.shape
    if M < min_rows_for_pallas:
        return (jnp.dot(x.astype(compute_dtype), w.astype(compute_dtype),
                        preferred_element_type=jnp.float32) + b)
    return linear_pallas(x, w, b, compute_dtype=compute_dtype, **kw)


# ----------------------------------------------------------------------------
# Vector quantization ('nearest') with fused commit / embedding SSE
# ----------------------------------------------------------------------------
def _vq_kernel(z_ref, cb_ref, c2_ref, noise_ref,
               q_noisy_ref, inds_ref, sse_ref, *, cross_dtype):
    R, C = z_ref.shape
    K = cb_ref.shape[0]

    z = z_ref[...]                                          # (R, C) f32 latent tile
    cb = cb_ref[...]                                        # (K, C) f32 codebook (resident)

    # dist = ||z||^2 + ||c||^2 - 2 z c^T ; cross term in bf16 on the MXU (v6e/v7x
    # native rate), everything else assembled/selected in f32.
    z2 = jnp.sum(z * z, axis=1, keepdims=True)              # (R, 1)
    cross = jax.lax.dot_general(                            # (R, K)
        z.astype(cross_dtype), cb.astype(cross_dtype),
        (((1,), (1,)), ((), ())), preferred_element_type=jnp.float32)
    dist = z2 + c2_ref[...] - 2.0 * cross

    # argmin over the codebook axis (first-match tie break, like torch.argmin)
    col = jax.lax.broadcasted_iota(jnp.int32, (R, K), 1)
    dmin = jnp.min(dist, axis=1, keepdims=True)             # (R, 1)
    inds_det = jnp.min(jnp.where(dist == dmin, col, K), axis=1, keepdims=True)

    # noisy indices: det + precomputed round(N(0, std)) offsets, clamped
    inds_noisy = jnp.clip(inds_det + noise_ref[...], 0, K - 1)   # (R, 1)

    # single one-hot gather (q_det is never materialized: commit SSE == sum(dmin))
    oh_noisy = (col == inds_noisy).astype(jnp.float32)      # (R, K)
    q_noisy = jnp.dot(oh_noisy, cb, preferred_element_type=jnp.float32)  # (R, C) exact
    q_noisy_ref[...] = q_noisy.astype(q_noisy_ref.dtype)

    # lane-dense noisy-index row: (1, R) via a matvec with the iota row
    # (avoids (R, 1) masked partial stores). Exact for K < 2^24.
    colf = jax.lax.broadcasted_iota(jnp.float32, (1, K), 1)
    idx_row = jax.lax.dot_general(
        colf, oh_noisy, (((1,), (1,)), ((), ())), preferred_element_type=jnp.float32)
    inds_ref[...] = idx_row.astype(jnp.int32)

    # Per-tile partial SSEs (megacore-friendly: no cross-iteration accumulator).
    # commit = sum ||z - c_argmin||^2 = sum(dmin) (clamped against cancellation);
    # embed  = sum ||q_noisy - z||^2 from the exactly-gathered q_noisy.
    commit = jnp.sum(jnp.maximum(dmin, 0.0))
    d_e = q_noisy - z
    embed = jnp.sum(d_e * d_e)
    sub = jax.lax.broadcasted_iota(jnp.int32, sse_ref.shape, 1)
    lane = jax.lax.broadcasted_iota(jnp.int32, sse_ref.shape, 2)
    sse_ref[...] = jnp.where((sub == 0) & (lane == 0), commit,
                             jnp.where((sub == 0) & (lane == 1), embed, 0.0))


def _pick_rows(n, pref):
    r = max(8, min(pref, n))
    while r > 8 and n % r != 0:
        r //= 2
    if n % r != 0:
        r = n          # single full tile (small N)
    return r


def vq_nearest(flat_latents, codebook, noise, *, tile_rows=512,
               cross_dtype=jnp.bfloat16,
               vmem_limit_bytes=40 * 1024 * 1024):
    """Returns (q_noisy (N,C) f32, inds_noisy (N,) int32, commit_sse, embed_sse)."""
    N, C = flat_latents.shape
    K = codebook.shape[0]
    assert K < (1 << 24)                  # f32 index matvec exactness
    assert noise.shape == (N, 1) and noise.dtype == jnp.int32

    # VMEM-aware row-tile choice: resident codebook + f32 (R,K)/(R,C) temporaries
    # + double-buffered streamed tiles must fit (v7x has only 64 MiB VMEM).
    resident = 4 * K * (C + 1)                               # codebook + ||c||^2
    per_row = 4 * (3 * K + 6 * C)                            # dist/one-hot/iota + z/q buffers (rough)
    budget = int(vmem_limit_bytes * 0.6) - resident
    max_rows = max(8, (budget // max(per_row, 1)) // 8 * 8)
    R = _pick_rows(N, min(tile_rows, max_rows))
    assert N % R == 0
    grid_n = N // R

    # ||c||^2 computed once in the wrapper (constant across the whole grid).
    c2 = jnp.sum(codebook * codebook, axis=1)[None, :]       # (1, K)

    cost = pl.CostEstimate(
        flops=int(4 * N * K * C + 8 * N * K),
        transcendentals=0,
        bytes_accessed=int(4 * (2 * N * C + K * C + K + 2 * N) + grid_n * 4096),
    )
    out_shape = (
        jax.ShapeDtypeStruct((N, C), jnp.float32),            # quantized_latents_noisy
        jax.ShapeDtypeStruct((1, N), jnp.int32),               # noisy encoding indices
        jax.ShapeDtypeStruct((grid_n, 8, 128), jnp.float32),   # per-tile [commit, embed] partials
    )
    grid_spec = pltpu.PrefetchScalarGridSpec(
        num_scalar_prefetch=0,
        grid=(grid_n,),
        in_specs=[
            pl.BlockSpec((R, C), lambda i: (i, 0)),            # latent tile (pipelined)
            pl.BlockSpec((K, C), lambda i: (0, 0)),            # codebook, resident
            pl.BlockSpec((1, K), lambda i: (0, 0)),            # ||c||^2, resident
            pl.BlockSpec((R, 1), lambda i: (i, 0)),            # precomputed index noise
        ],
        out_specs=(
            pl.BlockSpec((R, C), lambda i: (i, 0)),
            pl.BlockSpec((1, R), lambda i: (0, i)),            # lane-dense index row
            pl.BlockSpec((1, 8, 128), lambda i: (i, 0, 0)),    # per-tile SSE partials
        ),
    )
    q_noisy, inds, sse = pl.pallas_call(
        functools.partial(_vq_kernel, cross_dtype=cross_dtype),
        out_shape=out_shape,
        grid_spec=grid_spec,
        compiler_params=pltpu.CompilerParams(
            dimension_semantics=("parallel",),                 # megacore-shardable on v7x
            vmem_limit_bytes=vmem_limit_bytes,
        ),
        cost_estimate=cost,
    )(flat_latents, codebook, c2, noise)

    commit_sse = jnp.sum(sse[:, 0, 0])
    embed_sse = jnp.sum(sse[:, 0, 1])
    return q_noisy, inds[0], commit_sse, embed_sse


# ----------------------------------------------------------------------------
# PSN forward (mode == 'nearest')
# ----------------------------------------------------------------------------
def psn_forward_nearest(params, x, y, noise_key, quantization_noise_std,
                        beta=0.25, delta=1.0, matmul_dtype=jnp.bfloat16):
    B = x.shape[0]
    E, C = params["E"], params["C"]

    # pre_quantizer (synthetic linear): (B, C_in*H*W) -> (B, E, C)
    xf = x.reshape(B, -1).astype(jnp.float32)
    latents_2d = linear(xf, params["w_pre"], params["b_pre"],
                        compute_dtype=matmul_dtype)            # (B, E*C)
    latents = latents_2d.reshape(B, E, C)
    flat_latents = latents_2d.reshape(B * E, C)

    # index noise: round(N(0, std)), drawn host-side (matches torch.normal+round;
    # no in-kernel PRNG so the kernel also runs under interpret mode).
    noise = jnp.round(
        quantization_noise_std
        * jax.random.normal(noise_key, (B * E, 1), jnp.float32)).astype(jnp.int32)

    # nearest_neighbors against out_codebook (S == E, r == 1)
    q_noisy_flat, inds_noisy, commit_sse, embed_sse = vq_nearest(
        flat_latents, params["out_codebook"], noise, cross_dtype=matmul_dtype)
    q_noisy = q_noisy_flat.reshape(B, E, C)

    # noisy encoding indices, shape (B, E): only needed by the RestartManager
    # bookkeeping, which is omitted (see TODO at top of file).
    _encoding_inds_noisy = inds_noisy.reshape(B, E)

    # straight-through estimator: latents + (q_noisy - latents).detach()
    st = latents + jax.lax.stop_gradient(q_noisy - latents)

    # post_quantizer (synthetic linear): (B, E*C) -> (B, Dy)
    out = linear(st.reshape(B, E * C), params["w_post"], params["b_post"],
                 compute_dtype=matmul_dtype)

    # vqvae_loss = recon MSE + delta*(beta*MSE(latents, q_det.detach())
    #                                 + MSE(q_noisy, latents.detach()))
    # commit / embed SSEs come fused out of the VQ kernel; recon is a trivially
    # mem-bound reduction left to XLA.
    n_lat = flat_latents.size
    recon = jnp.mean(jnp.square(out - y))
    commit = commit_sse / n_lat
    embed = embed_sse / n_lat
    loss = recon + delta * (beta * commit + embed)
    return out, loss, None


# ----------------------------------------------------------------------------
# Deterministic parameter init (mirrors PSN.__init__ / initial_codebook)
# ----------------------------------------------------------------------------
def init_params(key, in_dim, y_dim, E, C, O):
    k1, k2, k3 = jax.random.split(key, 3)
    w_pre = 0.02 * jax.random.normal(k1, (in_dim, E * C), jnp.float32)
    b_pre = jnp.zeros((1, E * C), jnp.float32)
    w_post = 0.02 * jax.random.normal(k2, (E * C, y_dim), jnp.float32)
    b_post = jnp.zeros((1, y_dim), jnp.float32)
    # out_codebook: uniform(-1, 1), then subtract per-dim mean over codes
    cb = jax.random.uniform(k3, (O, C), jnp.float32, -1.0, 1.0)
    cb = cb - cb.mean(axis=0, keepdims=True)
    return dict(w_pre=w_pre, b_pre=b_pre, w_post=w_post, b_post=b_post,
                out_codebook=cb, E=E, C=C)


if __name__ == "__main__":
    key = jax.random.PRNGKey(0)
    kp, kx, ky, kn, kt = jax.random.split(key, 5)

    # --- standalone smoke test of the Pallas linear kernels at MXU-friendly shapes ---
    ka, kb = jax.random.split(kt)
    a = jax.random.normal(ka, (128, 1024), jnp.float32)
    wt = 0.05 * jax.random.normal(kb, (1024, 256), jnp.float32)
    bt = jnp.full((1, 256), 0.1, jnp.float32)
    ref = jnp.dot(a.astype(jnp.bfloat16), wt.astype(jnp.bfloat16),
                  preferred_element_type=jnp.float32) + bt
    got_acc = linear_pallas(a, wt, bt, tm=128, tn=256, tk=512)        # K-split (acc) path
    got_one = linear_pallas(a[:, :256], wt[:256], bt, tm=128, tn=256, tk=256)  # single-K path
    ref_one = jnp.dot(a[:, :256].astype(jnp.bfloat16), wt[:256].astype(jnp.bfloat16),
                      preferred_element_type=jnp.float32) + bt
    jax.block_until_ready((got_acc, got_one))
    assert jnp.allclose(got_acc, ref, rtol=1e-2, atol=1e-2)
    assert jnp.allclose(got_one, ref_one, rtol=1e-2, atol=1e-2)

    # --- PSN forward, mode='nearest', at the module's toy shapes ---
    B, C_in, H, W = 2, 4, 16, 16          # x: NCHW
    E, C, O = 8, 32, 64                   # inner seq len, codebook dim, out codebook size
    y_dim = E * C

    params = init_params(kp, C_in * H * W, y_dim, E, C, O)
    x = jax.random.normal(kx, (B, C_in, H, W), jnp.float32)
    y = jax.random.normal(ky, (B, y_dim), jnp.float32)

    out, loss, filenames = psn_forward_nearest(
        params, x, y, kn, quantization_noise_std=0.5)
    jax.block_until_ready((out, loss))
    assert out.shape == (B, y_dim) and loss.shape == ()
    assert bool(jnp.isfinite(loss))
    print("KERNEL_OK")
</pallas_src>

<mosaic_0001>
module attributes {stable_mosaic.version = 11 : i64} {
  func.func @_linear_kernel_acc(%arg0: i32, %arg1: i32, %arg2: i32, %arg3: memref<128x512xbf16, #tpu.memory_space<vmem>>, %arg4: memref<512x256xbf16, #tpu.memory_space<vmem>>, %arg5: memref<1x256xf32, #tpu.memory_space<vmem>>, %arg6: memref<128x256xf32, #tpu.memory_space<vmem>>, %arg7: memref<128x256xf32, #tpu.memory_space<vmem>>) attributes {dimension_semantics = [#tpu.dimension_semantics<parallel>, #tpu.dimension_semantics<parallel>, #tpu.dimension_semantics<arbitrary>], iteration_bounds = array<i64: 1, 1, 2>, scalar_prefetch = 0 : i64, scratch_operands = 1 : i64, tpu.core_type = #tpu.core_type<tc>, window_params = [{transform_indices = @transform_0, window_bounds = array<i64: 128, 512>}, {transform_indices = @transform_1, window_bounds = array<i64: 512, 256>}, {transform_indices = @transform_2, window_bounds = array<i64: 1, 256>}, {transform_indices = @transform_3, window_bounds = array<i64: 128, 256>}]} {
    %c0_i32 = arith.constant 0 : i32
    %0 = arith.cmpi eq, %arg2, %c0_i32 : i32
    %1 = arith.extui %0 : i1 to i32
    %c0_i32_0 = arith.constant 0 : i32
    %2 = arith.cmpi ne, %1, %c0_i32_0 : i32
    scf.if %2 {
      %cst_9 = arith.constant 0.000000e+00 : f32
      %12 = vector.broadcast %cst_9 : f32 to vector<128x256xf32>
      %c0_10 = arith.constant 0 : index
      %c0_11 = arith.constant 0 : index
      %13 = vector.load %arg7[%c0_10, %c0_11] : memref<128x256xf32, #tpu.memory_space<vmem>>, vector<128x256xf32>
      tpu.vector_store %arg7[%c0_10, %c0_11], %12 {strides = array<i32>} : memref<128x256xf32, #tpu.memory_space<vmem>>, vector<128x256xf32>,
    } else {
    }
    %c0 = arith.constant 0 : index
    %c0_1 = arith.constant 0 : index
    %3 = vector.load %arg7[%c0, %c0_1] : memref<128x256xf32, #tpu.memory_space<vmem>>, vector<128x256xf32>
    %c0_2 = arith.constant 0 : index
    %c0_3 = arith.constant 0 : index
    %4 = vector.load %arg3[%c0_2, %c0_3] : memref<128x512xbf16, #tpu.memory_space<vmem>>, vector<128x512xbf16>
    %c0_4 = arith.constant 0 : index
    %c0_5 = arith.constant 0 : index
    %5 = vector.load %arg4[%c0_4, %c0_5] : memref<512x256xbf16, #tpu.memory_space<vmem>>, vector<512x256xbf16>
    %cst = arith.constant dense<0.000000e+00> : vector<128x256xf32>
    %6 = tpu.matmul %4, %5, %cst {dimension_numbers = #tpu.dot_dimension_numbers<[1], [0], [0], [1], [0, 0, 1, 1], [], []>} : vector<128x512xbf16>, vector<512x256xbf16>, vector<128x256xf32> -> vector<128x256xf32>
    %7 = arith.addf %3, %6 : vector<128x256xf32>
    %c0_6 = arith.constant 0 : index
    %c0_7 = arith.constant 0 : index
    %8 = vector.load %arg7[%c0_6, %c0_7] : memref<128x256xf32, #tpu.memory_space<vmem>>, vector<128x256xf32>
    tpu.vector_store %arg7[%c0_6, %c0_7], %7 {strides = array<i32>} : memref<128x256xf32, #tpu.memory_space<vmem>>, vector<128x256xf32>,
    %c1_i32 = arith.constant 1 : i32
    %9 = arith.cmpi eq, %arg2, %c1_i32 : i32
    %10 = arith.extui %9 : i1 to i32
    %c0_i32_8 = arith.constant 0 : i32
    %11 = arith.cmpi ne, %10, %c0_i32_8 : i32
    scf.if %11 {
      %c0_9 = arith.constant 0 : index
      %c0_10 = arith.constant 0 : index
      %12 = vector.load %arg7[%c0_9, %c0_10] : memref<128x256xf32, #tpu.memory_space<vmem>>, vector<128x256xf32>
      %c0_11 = arith.constant 0 : index
      %c0_12 = arith.constant 0 : index
      %13 = vector.load %arg5[%c0_11, %c0_12] : memref<1x256xf32, #tpu.memory_space<vmem>>, vector<1x256xf32>
      %14 = vector.broadcast %13 : vector<1x256xf32> to vector<128x256xf32>
      %15 = arith.addf %12, %14 : vector<128x256xf32>
      %c0_13 = arith.constant 0 : index
      %c0_14 = arith.constant 0 : index
      %16 = vector.load %arg6[%c0_13, %c0_14] : memref<128x256xf32, #tpu.memory_space<vmem>>, vector<128x256xf32>
      tpu.vector_store %arg6[%c0_13, %c0_14], %15 {strides = array<i32>} : memref<128x256xf32, #tpu.memory_space<vmem>>, vector<128x256xf32>,
    } else {
    }
    return
  }
  func.func @transform_0(%arg0: i32, %arg1: i32, %arg2: i32) -> (i32, i32) {
    %c0_i32 = arith.constant 0 : i32
    return %arg0, %arg2 : i32, i32
  }
  func.func @transform_1(%arg0: i32, %arg1: i32, %arg2: i32) -> (i32, i32) {
    %c0_i32 = arith.constant 0 : i32
    return %arg2, %arg1 : i32, i32
  }
  func.func @transform_2(%arg0: i32, %arg1: i32, %arg2: i32) -> (i32, i32) {
    %c0_i32 = arith.constant 0 : i32
    %c0_i32_0 = arith.constant 0 : i32
    return %c0_i32, %arg1 : i32, i32
  }
  func.func @transform_3(%arg0: i32, %arg1: i32, %arg2: i32) -> (i32, i32) {
    %c0_i32 = arith.constant 0 : i32
    return %arg0, %arg1 : i32, i32
  }
}

</mosaic_0001>

<llo_original>
// kernel: tpu_custom_call.1
$region0: #{tpu_custom_call.1}
  #allocation0 [shape = 'u32[]', space=smem, size = 0x4, offset = 0x4, fixed_abs, tag = 'smem constant byte address 0x4 - core index']
  #allocation1 [shape = 'u32[144,128]{1,0:T(1,128)}', space=vmem, size = 0x12000, scoped, tag = 'internal scratch']
  #allocation2 [shape = 'f32[128,256]{1,0:T(8,128)}', space=vmem, size = 0x20000, scoped, tag = 'scratch operand']
  %s0 = inlined_call_operand.hbm [shape: bf16[128,1024], index: 0, kind: input, shape index: {}]
  %s1 = inlined_call_operand.hbm [shape: bf16[1024,256], index: 1, kind: input, shape index: {}]
  %s2 = inlined_call_operand.vmem [shape: f32[1,256], index: 2, kind: input, shape index: {}]
  %s3 = inlined_call_operand.hbm [shape: f32[128,256], index: 3, kind: output, shape index: {}]
  %s4 = sld [smem:[#allocation0]]
  $region61: #{tpu_custom_call.1} parent=0
    _
  %s6 = ssub.s32 1, %s4
  %s7 = scalar_select 0, %s6, %s4
  $region1: #{tpu_custom_call.1} parent=0
    #allocation3 [shape = 'u8[262144]{0}', space=vmem, size = 0x40000, scoped, tag = 'input window, operand 0']
    #allocation4 [shape = 's32[2]{0}', space=sflag, size = 0x8, scoped, tag = 'scoped memory for tpu_custom_call.1']
    #allocation5 [shape = 's32[2]{0}', space=sflag, size = 0x8, scoped, tag = 'scoped memory for tpu_custom_call.1']
    #allocation6 [shape = 'u8[524288]{0}', space=vmem, size = 0x80000, scoped, tag = 'input window, operand 1']
    #allocation7 [shape = 's32[2]{0}', space=sflag, size = 0x8, scoped, tag = 'scoped memory for tpu_custom_call.1']
    #allocation8 [shape = 'u8[131072]{0}', space=vmem, size = 0x20000, scoped, tag = 'output window, operand 0, single buffered']
    %8 = vsyncpa [#allocation4], 0
    %s9 = scalar_lea.sflag [#allocation4], 1
    %10 = vsyncpa %s9, 0
    %11 = vsyncpa [#allocation7], 0
    %s12 = scalar_lea.sflag [#allocation7], 1
    %13 = vsyncpa %s12, 0
    %14 = vsyncpa [#allocation5], 0
    loop: start=0, step=1, limit=4
    $region2: #{tpu_custom_call.1} parent=1 // loop_pre_header
      _
    $region3: #{tpu_custom_call.1} parent=1 // loop_header
      %s16 = sphi 0, %s20
      %p17 = scmp.ge.s32.totalorder %s16, 4
      %s23 = sphi 0, %s42
      %s24 = sphi 0, %s38
      %s25 = sphi 0, %s34
      %s26 = sphi 0, %s23
      %s27 = sphi 0, %s24
      %s28 = sphi 0, %s25
      %s29 = sphi 0, %s26
      %s30 = sphi 0, %s27
      %s31 = sphi 0, %s28
      %s47 = sphi 0, %s49
      %s50 = sphi 0, %s47
      %s51 = sphi 0, %s50
      %s67 = sphi 0, %s51
      %s75 = sphi 0, %s77
      %s78 = sphi 0, %s75
      %s79 = sphi 0, %s78
      %s95 = sphi 0, %s79
      %s101 = sphi 0, %s103
      %s104 = sphi 0, %s101
      %s105 = sphi 0, %s104
      %s121 = sphi 0, %s105
      %s129 = sphi 0, %s131
      %s132 = sphi 0, %s129
      %s133 = sphi 0, %s132
      %s149 = sphi 0, %s133
    $region4: #{tpu_custom_call.1} parent=1 // loop_header_branch
      %19 = sbr.rel (%p17) target = $region8
    $region5: #{tpu_custom_call.1} parent=1 // loop_body
      %s21 = ssub.s32 %s16, 1
      %s22 = ssub.s32 %s16, 2
      %s32 = sadd.s32 1, %s25
      %p33 = scmp.ge.s32.totalorder %s32, 2
      %s34 = scalar_select %p33, 0, %s32
      %s35 = sadd.s32 1, %s24
      %s36 = scalar_select %p33, %s35, %s24
      %p37 = scmp.ge.s32.totalorder %s36, 1
      %s38 = scalar_select %p37, 0, %s36
      %s39 = sadd.s32 1, %s23
      %s40 = scalar_select %p37, %s39, %s23
      %p41 = scmp.ge.s32.totalorder %s40, 1
      %s42 = scalar_select %p41, 0, %s40
      %s43 = ssub.s32 %s23, %s42
      %s44 = ssub.s32 %s25, %s34
      %s45 = sor.u32 %s43, %s44
      %p46 = scmp.eq.s32.totalorder %s45, 0
      %s48 = sadd.s32 %s47, 1
      %s49 = scalar_select %p46, %s47, %s48
      %p52 = pneg %p46
      %p53 = scmp.eq.s32.totalorder %s16, 1
      %p54 = por %p52, %p53
      %p55 = scmp.ne.s32.totalorder %s47, %s50
      %p56 = scmp.eq.s32.totalorder %s16, 0
      %p57 = por %p55, %p56
      %p58 = scmp.ne.s32.totalorder %s47, %s50
      %p59 = scmp.eq.s32.totalorder %s21, 1
      %p60 = por %p58, %p59
      %p61 = scmp.ne.s32.totalorder %s50, %s51
      %p62 = scmp.eq.s32.totalorder %s21, 0
      %p63 = por %p61, %p62
      %p64 = scmp.ne.s32.totalorder %s50, %s51
      %p65 = scmp.eq.s32.totalorder %s22, 1
      %p66 = por %p64, %p65
      %p68 = scmp.ne.s32.totalorder %s51, %s67
      %p69 = scmp.eq.s32.totalorder %s22, 0
      %p70 = por %p68, %p69
      %s71 = ssub.s32 %s25, %s34
      %s72 = ssub.s32 %s24, %s38
      %s73 = sor.u32 %s71, %s72
      %p74 = scmp.eq.s32.totalorder %s73, 0
      %s76 = sadd.s32 %s75, 1
      %s77 = scalar_select %p74, %s75, %s76
      %p80 = pneg %p74
      %p81 = scmp.eq.s32.totalorder %s16, 1
      %p82 = por %p80, %p81
      %p83 = scmp.ne.s32.totalorder %s75, %s78
      %p84 = scmp.eq.s32.totalorder %s16, 0
      %p85 = por %p83, %p84
      %p86 = scmp.ne.s32.totalorder %s75, %s78
      %p87 = scmp.eq.s32.totalorder %s21, 1
      %p88 = por %p86, %p87
      %p89 = scmp.ne.s32.totalorder %s78, %s79
      %p90 = scmp.eq.s32.totalorder %s21, 0
      %p91 = por %p89, %p90
      %p92 = scmp.ne.s32.totalorder %s78, %s79
      %p93 = scmp.eq.s32.totalorder %s22, 1
      %p94 = por %p92, %p93
      %p96 = scmp.ne.s32.totalorder %s79, %s95
      %p97 = scmp.eq.s32.totalorder %s22, 0
      %p98 = por %p96, %p97
      %s99 = ssub.s32 %s24, %s38
      %p100 = scmp.eq.s32.totalorder %s99, 0
      %s102 = sadd.s32 %s101, 1
      %s103 = scalar_select %p100, %s101, %s102
      %p106 = pneg %p100
      %p107 = scmp.eq.s32.totalorder %s16, 1
      %p108 = por %p106, %p107
      %p109 = scmp.ne.s32.totalorder %s101, %s104
      %p110 = scmp.eq.s32.totalorder %s16, 0
      %p111 = por %p109, %p110
      %p112 = scmp.ne.s32.totalorder %s101, %s104
      %p113 = scmp.eq.s32.totalorder %s21, 1
      %p114 = por %p112, %p113
      %p115 = scmp.ne.s32.totalorder %s104, %s105
      %p116 = scmp.eq.s32.totalorder %s21, 0
      %p117 = por %p115, %p116
      %p118 = scmp.ne.s32.totalorder %s104, %s105
      %p119 = scmp.eq.s32.totalorder %s22, 1
      %p120 = por %p118, %p119
      %p122 = scmp.ne.s32.totalorder %s105, %s121
      %p123 = scmp.eq.s32.totalorder %s22, 0
      %p124 = por %p122, %p123
      %s125 = ssub.s32 %s23, %s42
      %s126 = ssub.s32 %s24, %s38
      %s127 = sor.u32 %s125, %s126
      %p128 = scmp.eq.s32.totalorder %s127, 0
      %s130 = sadd.s32 %s129, 1
      %s131 = scalar_select %p128, %s129, %s130
      %p134 = pneg %p128
      %p135 = scmp.eq.s32.totalorder %s16, 1
      %p136 = por %p134, %p135
      %p137 = scmp.ne.s32.totalorder %s129, %s132
      %p138 = scmp.eq.s32.totalorder %s16, 0
      %p139 = por %p137, %p138
      %p140 = scmp.ne.s32.totalorder %s129, %s132
      %p141 = scmp.eq.s32.totalorder %s21, 1
      %p142 = por %p140, %p141
      %p143 = scmp.ne.s32.totalorder %s132, %s133
      %p144 = scmp.eq.s32.totalorder %s21, 0
      %p145 = por %p143, %p144
      %p146 = scmp.ne.s32.totalorder %s132, %s133
      %p147 = scmp.eq.s32.totalorder %s22, 1
      %p148 = por %p146, %p147
      %p150 = scmp.ne.s32.totalorder %s133, %s149
      %p151 = scmp.eq.s32.totalorder %s22, 0
      %p152 = por %p150, %p151
      %p153 = scmp.le.s32.totalorder 1, %s16
      %p154 = scmp.lt.s32.totalorder %s16, 3
      %p155 = pnand %p153, %p154
      %p156 = pneg %p155
      // Predicated region
      $region9: #{tpu_custom_call.1} parent=5 // pred_check
        _
      $region10: #{tpu_custom_call.1} parent=5 // pred_check_branch
        %158 = sbr.rel (%p155) target = $region12
      $region11: #{tpu_custom_call.1} parent=5 // pred_region
        %s159 = ssub.s32 %s16, 1
        // Predicated region
        $region13: #{tpu_custom_call.1} parent=11 // pred_check
          %p160 = pneg %p117
        $region14: #{tpu_custom_call.1} parent=11 // pred_check_branch
          %162 = sbr.rel (%p160) target = $region16
        $region15: #{tpu_custom_call.1} parent=11 // pred_region
          %s163 = smul.u32 2, %s27
          %p164 = scmp.lt.s32.totalorder %s163, 1
          %s165 = scalar_select %p164, %s163, 1
          %s166 = scalar_lea.vmem %s2, %s165
          %s167 = smul.u32 2, %s27
        $region16: #{tpu_custom_call.1} parent=11 // pred_fallthru
          _
      $region12: #{tpu_custom_call.1} parent=5 // pred_fallthru
        _
      %p168 = scmp.lt.s32.totalorder %s16, 2
      // Predicated region
      $region17: #{tpu_custom_call.1} parent=5 // pred_check
        %p169 = pneg %p168
      $region18: #{tpu_custom_call.1} parent=5 // pred_check_branch
        %171 = sbr.rel (%p169) target = $region20
      $region19: #{tpu_custom_call.1} parent=5 // pred_region
        // Predicated region
        $region21: #{tpu_custom_call.1} parent=19 // pred_check
          %p172 = pneg %p57
        $region22: #{tpu_custom_call.1} parent=19 // pred_check_branch
          %174 = sbr.rel (%p172) target = $region24
        $region23: #{tpu_custom_call.1} parent=19 // pred_region
          %s175 = sand.u32 %s47, 1
          %s176 = scalar_lea.sflag [#allocation4], %s175
          %s177 = sand.u32 %s47, 1
          %s178 = smul.addr %s177, 256
          %s179 = scalar_lea.vmem [#allocation3], %s178
          %s180 = smul.u32 16, %s23
          %s181 = smul.u32 4, %s25
          %s183 = ssub.s32 4096, 4096
          %184 = vsyncadd %s176, %s183
          %s185 = smul.addr %s180, 8
          %s186 = sadd.s32 %s181, %s185
          %s187 = smul.addr %s186, 64
          %s188 = scalar_lea.hbm %s0, %s187
          %s189 = sshll.u32 %s179, 4
          %s190 = int_to_ptr.vmem [resolvable:$true] %s189
          %195 = dma.hbm_to_vmem [thread:$0]  %s188, 4096, %s190, %s176, 512, 256, 16
        $region24: #{tpu_custom_call.1} parent=19 // pred_fallthru
          _
        // Predicated region
        $region25: #{tpu_custom_call.1} parent=19 // pred_check
          %p196 = pneg %p85
        $region26: #{tpu_custom_call.1} parent=19 // pred_check_branch
          %198 = sbr.rel (%p196) target = $region28
        $region27: #{tpu_custom_call.1} parent=19 // pred_region
          %s199 = sand.u32 %s75, 1
          %s200 = scalar_lea.sflag [#allocation7], %s199
          %s201 = sand.u32 %s75, 1
          %s202 = smul.addr %s201, 512
          %s203 = scalar_lea.vmem [#allocation6], %s202
          %s204 = smul.u32 64, %s25
          %s205 = smul.u32 2, %s24
          %s207 = ssub.s32 8192, 8192
          %208 = vsyncadd %s200, %s207
          %s209 = smul.addr %s204, 2
          %s210 = sadd.s32 %s205, %s209
          %s211 = smul.addr %s210, 64
          %s212 = scalar_lea.hbm %s1, %s211
          %s213 = sshll.u32 %s203, 4
          %s214 = int_to_ptr.vmem [resolvable:$true] %s213
          %219 = dma.hbm_to_vmem [thread:$0]  %s212, 8192, %s214, %s200, 128, 128, 8
        $region28: #{tpu_custom_call.1} parent=19 // pred_fallthru
          _
      $region20: #{tpu_custom_call.1} parent=5 // pred_fallthru
        _
      %p220 = scmp.le.s32.totalorder 1, %s16
      %p221 = scmp.lt.s32.totalorder %s16, 3
      %p222 = pnand %p220, %p221
      %p223 = pneg %p222
      // Predicated region
      $region29: #{tpu_custom_call.1} parent=5 // pred_check
        _
      $region30: #{tpu_custom_call.1} parent=5 // pred_check_branch
        %225 = sbr.rel (%p222) target = $region32
      $region31: #{tpu_custom_call.1} parent=5 // pred_region
        %s226 = ssub.s32 %s16, 1
        %s227 = sand.u32 %s50, 1
        %s228 = scalar_lea.sflag [#allocation4], %s227
        %s229 = sand.u32 %s50, 1
        %s230 = smul.addr %s229, 256
        %s231 = scalar_lea.vmem [#allocation3], %s230
        // Predicated region
        $region33: #{tpu_custom_call.1} parent=31 // pred_check
          %p232 = pneg %p63
        $region34: #{tpu_custom_call.1} parent=31 // pred_check_branch
          %234 = sbr.rel (%p232) target = $region36
        $region35: #{tpu_custom_call.1} parent=31 // pred_region
          %235 = dma.done %s228, 4096
        $region36: #{tpu_custom_call.1} parent=31 // pred_fallthru
          _
        %s236 = sand.u32 %s78, 1
        %s237 = scalar_lea.sflag [#allocation7], %s236
        %s238 = sand.u32 %s78, 1
        %s239 = smul.addr %s238, 512
        %s240 = scalar_lea.vmem [#allocation6], %s239
        // Predicated region
        $region37: #{tpu_custom_call.1} parent=31 // pred_check
          %p241 = pneg %p91
        $region38: #{tpu_custom_call.1} parent=31 // pred_check_branch
          %243 = sbr.rel (%p241) target = $region40
        $region39: #{tpu_custom_call.1} parent=31 // pred_region
          %244 = dma.done %s237, 8192
        $region40: #{tpu_custom_call.1} parent=31 // pred_fallthru
          _
        %s245 = sand.u32 %s50, 1
        %s246 = scalar_lea.sflag [#allocation4], %s245
        %s247 = sand.u32 %s50, 1
        %s248 = smul.addr %s247, 256
        %s249 = scalar_lea.vmem [#allocation3], %s248
        %p250 = pneg %p63
        %p251 = pneg %p60
        %s252 = sand.u32 %s78, 1
        %s253 = scalar_lea.sflag [#allocation7], %s252
        %s254 = sand.u32 %s78, 1
        %s255 = smul.addr %s254, 512
        %s256 = scalar_lea.vmem [#allocation6], %s255
        %p257 = pneg %p91
        %p258 = pneg %p88
        %s259 = smul.u32 2, %s27
        %p260 = scmp.lt.s32.totalorder %s259, 1
        %s261 = scalar_select %p260, %s259, 1
        %s262 = scalar_lea.vmem %s2, %s261
        %p263 = pneg %p117
        %p264 = pneg %p114
        %p265 = pneg %p145
        %p266 = pneg %p142
        %s267 = smul.u32 16, %s26
        %s268 = smul.u32 4, %s28
        %s269 = smul.u32 64, %s28
        %s270 = smul.u32 2, %s27
        %s271 = smul.u32 2, %s27
        %p272 = scmp.lt.s32.totalorder %s271, 1
        %s273 = scalar_select %p272, %s271, 1
        %s274 = scalar_lea.vmem %s2, %s273
        %s275 = smul.u32 2, %s27
        %s276 = smul.u32 16, %s26
        %s277 = smul.u32 2, %s27
        %p278 = scmp.eq.s32.totalorder %s28, 0
        // Predicated region
        $region41: #{tpu_custom_call.1} parent=31 // pred_check
          %p279 = pneg %p278
        $region42: #{tpu_custom_call.1} parent=31 // pred_check_branch
          %281 = sbr.rel (%p279) target = $region44
        $region43: #{tpu_custom_call.1} parent=31 // pred_region
          %282 = vst [vmem:[#allocation2] sm:$0xff] 0.0
          %283 = vst [vmem:[#allocation2 + $0x8] sm:$0xff] 0.0
          %284 = vst [vmem:[#allocation2 + $0x10] sm:$0xff] 0.0
          %285 = vst [vmem:[#allocation2 + $0x18] sm:$0xff] 0.0
          %286 = vst [vmem:[#allocation2 + $0x20] sm:$0xff] 0.0
          %287 = vst [vmem:[#allocation2 + $0x28] sm:$0xff] 0.0
          %288 = vst [vmem:[#allocation2 + $0x30] sm:$0xff] 0.0
          %289 = vst [vmem:[#allocation2 + $0x38] sm:$0xff] 0.0
          %290 = vst [vmem:[#allocation2 + $0x40] sm:$0xff] 0.0
          %291 = vst [vmem:[#allocation2 + $0x48] sm:$0xff] 0.0
          %292 = vst [vmem:[#allocation2 + $0x50] sm:$0xff] 0.0
          %293 = vst [vmem:[#allocation2 + $0x58] sm:$0xff] 0.0
          %294 = vst [vmem:[#allocation2 + $0x60] sm:$0xff] 0.0
          %295 = vst [vmem:[#allocation2 + $0x68] sm:$0xff] 0.0
          %296 = vst [vmem:[#allocation2 + $0x70] sm:$0xff] 0.0
          %297 = vst [vmem:[#allocation2 + $0x78] sm:$0xff] 0.0
          %298 = vst [vmem:[#allocation2 + $0x80] sm:$0xff] 0.0
          %299 = vst [vmem:[#allocation2 + $0x88] sm:$0xff] 0.0
          %300 = vst [vmem:[#allocation2 + $0x90] sm:$0xff] 0.0
          %301 = vst [vmem:[#allocation2 + $0x98] sm:$0xff] 0.0
          %302 = vst [vmem:[#allocation2 + $0xa0] sm:$0xff] 0.0
          %303 = vst [vmem:[#allocation2 + $0xa8] sm:$0xff] 0.0
          %304 = vst [vmem:[#allocation2 + $0xb0] sm:$0xff] 0.0
          %305 = vst [vmem:[#allocation2 + $0xb8] sm:$0xff] 0.0
          %306 = vst [vmem:[#allocation2 + $0xc0] sm:$0xff] 0.0
          %307 = vst [vmem:[#allocation2 + $0xc8] sm:$0xff] 0.0
          %308 = vst [vmem:[#allocation2 + $0xd0] sm:$0xff] 0.0
          %309 = vst [vmem:[#allocation2 + $0xd8] sm:$0xff] 0.0
          %310 = vst [vmem:[#allocation2 + $0xe0] sm:$0xff] 0.0
          %311 = vst [vmem:[#allocation2 + $0xe8] sm:$0xff] 0.0
          %312 = vst [vmem:[#allocation2 + $0xf0] sm:$0xff] 0.0
          %313 = vst [vmem:[#allocation2 + $0xf8] sm:$0xff] 0.0
        $region44: #{tpu_custom_call.1} parent=31 // pred_fallthru
          _
        %v314 = vld [vmem:[#allocation2] sm:$0xff]
        %v315 = vld [vmem:[#allocation2 + $0x8] sm:$0xff]
        %v316 = vld [vmem:[#allocation2 + $0x10] sm:$0xff]
        %v317 = vld [vmem:[#allocation2 + $0x18] sm:$0xff]
        %v318 = vld [vmem:[#allocation2 + $0x20] sm:$0xff]
        %v319 = vld [vmem:[#allocation2 + $0x28] sm:$0xff]
        %v320 = vld [vmem:[#allocation2 + $0x30] sm:$0xff]
        %v321 = vld [vmem:[#allocation2 + $0x38] sm:$0xff]
        %v322 = vld [vmem:[#allocation2 + $0x40] sm:$0xff]
        %v323 = vld [vmem:[#allocation2 + $0x48] sm:$0xff]
        %v324 = vld [vmem:[#allocation2 + $0x50] sm:$0xff]
        %v325 = vld [vmem:[#allocation2 + $0x58] sm:$0xff]
        %v326 = vld [vmem:[#allocation2 + $0x60] sm:$0xff]
        %v327 = vld [vmem:[#allocation2 + $0x68] sm:$0xff]
        %v328 = vld [vmem:[#allocation2 + $0x70] sm:$0xff]
        %v329 = vld [vmem:[#allocation2 + $0x78] sm:$0xff]
        %v330 = vld [vmem:[#allocation2 + $0x80] sm:$0xff]
        %v331 = vld [vmem:[#allocation2 + $0x88] sm:$0xff]
        %v332 = vld [vmem:[#allocation2 + $0x90] sm:$0xff]
        %v333 = vld [vmem:[#allocation2 + $0x98] sm:$0xff]
        %v334 = vld [vmem:[#allocation2 + $0xa0] sm:$0xff]
        %v335 = vld [vmem:[#allocation2 + $0xa8] sm:$0xff]
        %v336 = vld [vmem:[#allocation2 + $0xb0] sm:$0xff]
        %v337 = vld [vmem:[#allocation2 + $0xb8] sm:$0xff]
        %v338 = vld [vmem:[#allocation2 + $0xc0] sm:$0xff]
        %v339 = vld [vmem:[#allocation2 + $0xc8] sm:$0xff]
        %v340 = vld [vmem:[#allocation2 + $0xd0] sm:$0xff]
        %v341 = vld [vmem:[#allocation2 + $0xd8] sm:$0xff]
        %v342 = vld [vmem:[#allocation2 + $0xe0] sm:$0xff]
        %v343 = vld [vmem:[#allocation2 + $0xe8] sm:$0xff]
        %v344 = vld [vmem:[#allocation2 + $0xf0] sm:$0xff]
        %v345 = vld [vmem:[#allocation2 + $0xf8] sm:$0xff]
        %v346 = vld [vmem:[%s231] sm:$0xff]
        %v347 = vld [vmem:[%s231 + $0x8] sm:$0xff]
        %v348 = vld [vmem:[%s231 + $0x10] sm:$0xff]
        %v349 = vld [vmem:[%s231 + $0x18] sm:$0xff]
        %v350 = vld [vmem:[%s231 + $0x20] sm:$0xff]
        %v351 = vld [vmem:[%s231 + $0x28] sm:$0xff]
        %v352 = vld [vmem:[%s231 + $0x30] sm:$0xff]
        %v353 = vld [vmem:[%s231 + $0x38] sm:$0xff]
        %v354 = vld [vmem:[%s231 + $0x40] sm:$0xff]
        %v355 = vld [vmem:[%s231 + $0x48] sm:$0xff]
        %v356 = vld [vmem:[%s231 + $0x50] sm:$0xff]
        %v357 = vld [vmem:[%s231 + $0x58] sm:$0xff]
        %v358 = vld [vmem:[%s231 + $0x60] sm:$0xff]
        %v359 = vld [vmem:[%s231 + $0x68] sm:$0xff]
        %v360 = vld [vmem:[%s231 + $0x70] sm:$0xff]
        %v361 = vld [vmem:[%s231 + $0x78] sm:$0xff]
        %v362 = vld [vmem:[%s231 + $0x80] sm:$0xff]
        %v363 = vld [vmem:[%s231 + $0x88] sm:$0xff]
        %v364 = vld [vmem:[%s231 + $0x90] sm:$0xff]
        %v365 = vld [vmem:[%s231 + $0x98] sm:$0xff]
        %v366 = vld [vmem:[%s231 + $0xa0] sm:$0xff]
        %v367 = vld [vmem:[%s231 + $0xa8] sm:$0xff]
        %v368 = vld [vmem:[%s231 + $0xb0] sm:$0xff]
        %v369 = vld [vmem:[%s231 + $0xb8] sm:$0xff]
        %v370 = vld [vmem:[%s231 + $0xc0] sm:$0xff]
        %v371 = vld [vmem:[%s231 + $0xc8] sm:$0xff]
        %v372 = vld [vmem:[%s231 + $0xd0] sm:$0xff]
        %v373 = vld [vmem:[%s231 + $0xd8] sm:$0xff]
        %v374 = vld [vmem:[%s231 + $0xe0] sm:$0xff]
        %v375 = vld [vmem:[%s231 + $0xe8] sm:$0xff]
        %v376 = vld [vmem:[%s231 + $0xf0] sm:$0xff]
        %v377 = vld [vmem:[%s231 + $0xf8] sm:$0xff]
        %v378 = vld [vmem:[%s240] sm:$0xff]
        %v379 = vld [vmem:[%s240 + $0x8] sm:$0xff]
        %v380 = vld [vmem:[%s240 + $0x10] sm:$0xff]
        %v381 = vld [vmem:[%s240 + $0x18] sm:$0xff]
        %v382 = vld [vmem:[%s240 + $0x20] sm:$0xff]
        %v383 = vld [vmem:[%s240 + $0x28] sm:$0xff]
        %v384 = vld [vmem:[%s240 + $0x30] sm:$0xff]
        %v385 = vld [vmem:[%s240 + $0x38] sm:$0xff]
        %v386 = vld [vmem:[%s240 + $0x40] sm:$0xff]
        %v387 = vld [vmem:[%s240 + $0x48] sm:$0xff]
        %v388 = vld [vmem:[%s240 + $0x50] sm:$0xff]
        %v389 = vld [vmem:[%s240 + $0x58] sm:$0xff]
        %v390 = vld [vmem:[%s240 + $0x60] sm:$0xff]
        %v391 = vld [vmem:[%s240 + $0x68] sm:$0xff]
        %v392 = vld [vmem:[%s240 + $0x70] sm:$0xff]
        %v393 = vld [vmem:[%s240 + $0x78] sm:$0xff]
        %v394 = vld [vmem:[%s240 + $0x80] sm:$0xff]
        %v395 = vld [vmem:[%s240 + $0x88] sm:$0xff]
        %v396 = vld [vmem:[%s240 + $0x90] sm:$0xff]
        %v397 = vld [vmem:[%s240 + $0x98] sm:$0xff]
        %v398 = vld [vmem:[%s240 + $0xa0] sm:$0xff]
        %v399 = vld [vmem:[%s240 + $0xa8] sm:$0xff]
        %v400 = vld [vmem:[%s240 + $0xb0] sm:$0xff]
        %v401 = vld [vmem:[%s240 + $0xb8] sm:$0xff]
        %v402 = vld [vmem:[%s240 + $0xc0] sm:$0xff]
        %v403 = vld [vmem:[%s240 + $0xc8] sm:$0xff]
        %v404 = vld [vmem:[%s240 + $0xd0] sm:$0xff]
        %v405 = vld [vmem:[%s240 + $0xd8] sm:$0xff]
        %v406 = vld [vmem:[%s240 + $0xe0] sm:$0xff]
        %v407 = vld [vmem:[%s240 + $0xe8] sm:$0xff]
        %v408 = vld [vmem:[%s240 + $0xf0] sm:$0xff]
        %v409 = vld [vmem:[%s240 + $0xf8] sm:$0xff]
        %v410 = vld [vmem:[%s240 + $0x100] sm:$0xff]
        %v411 = vld [vmem:[%s240 + $0x108] sm:$0xff]
        %v412 = vld [vmem:[%s240 + $0x110] sm:$0xff]
        %v413 = vld [vmem:[%s240 + $0x118] sm:$0xff]
        %v414 = vld [vmem:[%s240 + $0x120] sm:$0xff]
        %v415 = vld [vmem:[%s240 + $0x128] sm:$0xff]
        %v416 = vld [vmem:[%s240 + $0x130] sm:$0xff]
        %v417 = vld [vmem:[%s240 + $0x138] sm:$0xff]
        %v418 = vld [vmem:[%s240 + $0x140] sm:$0xff]
        %v419 = vld [vmem:[%s240 + $0x148] sm:$0xff]
        %v420 = vld [vmem:[%s240 + $0x150] sm:$0xff]
        %v421 = vld [vmem:[%s240 + $0x158] sm:$0xff]
        %v422 = vld [vmem:[%s240 + $0x160] sm:$0xff]
        %v423 = vld [vmem:[%s240 + $0x168] sm:$0xff]
        %v424 = vld [vmem:[%s240 + $0x170] sm:$0xff]
        %v425 = vld [vmem:[%s240 + $0x178] sm:$0xff]
        %v426 = vld [vmem:[%s240 + $0x180] sm:$0xff]
        %v427 = vld [vmem:[%s240 + $0x188] sm:$0xff]
        %v428 = vld [vmem:[%s240 + $0x190] sm:$0xff]
        %v429 = vld [vmem:[%s240 + $0x198] sm:$0xff]
        %v430 = vld [vmem:[%s240 + $0x1a0] sm:$0xff]
        %v431 = vld [vmem:[%s240 + $0x1a8] sm:$0xff]
        %v432 = vld [vmem:[%s240 + $0x1b0] sm:$0xff]
        %v433 = vld [vmem:[%s240 + $0x1b8] sm:$0xff]
        %v434 = vld [vmem:[%s240 + $0x1c0] sm:$0xff]
        %v435 = vld [vmem:[%s240 + $0x1c8] sm:$0xff]
        %v436 = vld [vmem:[%s240 + $0x1d0] sm:$0xff]
        %v437 = vld [vmem:[%s240 + $0x1d8] sm:$0xff]
        %v438 = vld [vmem:[%s240 + $0x1e0] sm:$0xff]
        %v439 = vld [vmem:[%s240 + $0x1e8] sm:$0xff]
        %v440 = vld [vmem:[%s240 + $0x1f0] sm:$0xff]
        %v441 = vld [vmem:[%s240 + $0x1f8] sm:$0xff]
        %v474 = vunpack.c.l.b16 %v346
        %v475 = vunpack.c.h.b16 %v346
        %v476 = vunpack.c.l.b16 %v347
        %v477 = vunpack.c.h.b16 %v347
        %v478 = vunpack.c.l.b16 %v348
        %v479 = vunpack.c.h.b16 %v348
        %v480 = vunpack.c.l.b16 %v349
        %v481 = vunpack.c.h.b16 %v349
        %v482 = vunpack.c.l.b16 %v350
        %v483 = vunpack.c.h.b16 %v350
        %v484 = vunpack.c.l.b16 %v351
        %v485 = vunpack.c.h.b16 %v351
        %v486 = vunpack.c.l.b16 %v352
        %v487 = vunpack.c.h.b16 %v352
        %v488 = vunpack.c.l.b16 %v353
        %v489 = vunpack.c.h.b16 %v353
        %v490 = vunpack.c.l.b16 %v354
        %v491 = vunpack.c.h.b16 %v354
        %v492 = vunpack.c.l.b16 %v355
        %v493 = vunpack.c.h.b16 %v355
        %v494 = vunpack.c.l.b16 %v356
        %v495 = vunpack.c.h.b16 %v356
        %v496 = vunpack.c.l.b16 %v357
        %v497 = vunpack.c.h.b16 %v357
        %v498 = vunpack.c.l.b16 %v358
        %v499 = vunpack.c.h.b16 %v358
        %v500 = vunpack.c.l.b16 %v359
        %v501 = vunpack.c.h.b16 %v359
        %v502 = vunpack.c.l.b16 %v360
        %v503 = vunpack.c.h.b16 %v360
        %v504 = vunpack.c.l.b16 %v361
        %v505 = vunpack.c.h.b16 %v361
        %v506 = vunpack.c.l.b16 %v362
        %v507 = vunpack.c.h.b16 %v362
        %v508 = vunpack.c.l.b16 %v363
        %v509 = vunpack.c.h.b16 %v363
        %v510 = vunpack.c.l.b16 %v364
        %v511 = vunpack.c.h.b16 %v364
        %v512 = vunpack.c.l.b16 %v365
        %v513 = vunpack.c.h.b16 %v365
        %v514 = vunpack.c.l.b16 %v366
        %v515 = vunpack.c.h.b16 %v366
        %v516 = vunpack.c.l.b16 %v367
        %v517 = vunpack.c.h.b16 %v367
        %v518 = vunpack.c.l.b16 %v368
        %v519 = vunpack.c.h.b16 %v368
        %v520 = vunpack.c.l.b16 %v369
        %v521 = vunpack.c.h.b16 %v369
        %v522 = vunpack.c.l.b16 %v370
        %v523 = vunpack.c.h.b16 %v370
        %v524 = vunpack.c.l.b16 %v371
        %v525 = vunpack.c.h.b16 %v371
        %v526 = vunpack.c.l.b16 %v372
        %v527 = vunpack.c.h.b16 %v372
        %v528 = vunpack.c.l.b16 %v373
        %v529 = vunpack.c.h.b16 %v373
        %v530 = vunpack.c.l.b16 %v374
        %v531 = vunpack.c.h.b16 %v374
        %v532 = vunpack.c.l.b16 %v375
        %v533 = vunpack.c.h.b16 %v375
        %v534 = vunpack.c.l.b16 %v376
        %v535 = vunpack.c.h.b16 %v376
        %v536 = vunpack.c.l.b16 %v377
        %v537 = vunpack.c.h.b16 %v377
        %v538 = vpack.c.b16 %v478, %v474
        %v539 = vpack.c.b16 %v479, %v475
        %v540 = vpack.c.b16 %v480, %v476
        %v541 = vpack.c.b16 %v481, %v477
        %v542 = vpack.c.b16 %v486, %v482
        %v543 = vpack.c.b16 %v487, %v483
        %v544 = vpack.c.b16 %v488, %v484
        %v545 = vpack.c.b16 %v489, %v485
        %v546 = vpack.c.b16 %v494, %v490
        %v547 = vpack.c.b16 %v495, %v491
        %v548 = vpack.c.b16 %v496, %v492
        %v549 = vpack.c.b16 %v497, %v493
        %v550 = vpack.c.b16 %v502, %v498
        %v551 = vpack.c.b16 %v503, %v499
        %v552 = vpack.c.b16 %v504, %v500
        %v553 = vpack.c.b16 %v505, %v501
        %v554 = vpack.c.b16 %v510, %v506
        %v555 = vpack.c.b16 %v511, %v507
        %v556 = vpack.c.b16 %v512, %v508
        %v557 = vpack.c.b16 %v513, %v509
        %v558 = vpack.c.b16 %v518, %v514
        %v559 = vpack.c.b16 %v519, %v515
        %v560 = vpack.c.b16 %v520, %v516
        %v561 = vpack.c.b16 %v521, %v517
        %v562 = vpack.c.b16 %v526, %v522
        %v563 = vpack.c.b16 %v527, %v523
        %v564 = vpack.c.b16 %v528, %v524
        %v565 = vpack.c.b16 %v529, %v525
        %v566 = vpack.c.b16 %v534, %v530
        %v567 = vpack.c.b16 %v535, %v531
        %v568 = vpack.c.b16 %v536, %v532
        %v569 = vpack.c.b16 %v537, %v533
        %v666 = vunpack.c.l.b16 %v378
        %v667 = vunpack.c.h.b16 %v378
        %v668 = vunpack.c.l.b16 %v379
        %v669 = vunpack.c.h.b16 %v379
        %v670 = vunpack.c.l.b16 %v380
        %v671 = vunpack.c.h.b16 %v380
        %v672 = vunpack.c.l.b16 %v381
        %v673 = vunpack.c.h.b16 %v381
        %v674 = vunpack.c.l.b16 %v382
        %v675 = vunpack.c.h.b16 %v382
        %v676 = vunpack.c.l.b16 %v383
        %v677 = vunpack.c.h.b16 %v383
        %v678 = vunpack.c.l.b16 %v384
        %v679 = vunpack.c.h.b16 %v384
        %v680 = vunpack.c.l.b16 %v385
        %v681 = vunpack.c.h.b16 %v385
        %v682 = vunpack.c.l.b16 %v386
        %v683 = vunpack.c.h.b16 %v386
        %v684 = vunpack.c.l.b16 %v387
        %v685 = vunpack.c.h.b16 %v387
        %v686 = vunpack.c.l.b16 %v388
        %v687 = vunpack.c.h.b16 %v388
        %v688 = vunpack.c.l.b16 %v389
        %v689 = vunpack.c.h.b16 %v389
        %v690 = vunpack.c.l.b16 %v390
        %v691 = vunpack.c.h.b16 %v390
        %v692 = vunpack.c.l.b16 %v391
        %v693 = vunpack.c.h.b16 %v391
        %v694 = vunpack.c.l.b16 %v392
        %v695 = vunpack.c.h.b16 %v392
        %v696 = vunpack.c.l.b16 %v393
        %v697 = vunpack.c.h.b16 %v393
        %v698 = vunpack.c.l.b16 %v394
        %v699 = vunpack.c.h.b16 %v394
        %v700 = vunpack.c.l.b16 %v395
        %v701 = vunpack.c.h.b16 %v395
        %v702 = vunpack.c.l.b16 %v396
        %v703 = vunpack.c.h.b16 %v396
        %v704 = vunpack.c.l.b16 %v397
        %v705 = vunpack.c.h.b16 %v397
        %v706 = vunpack.c.l.b16 %v398
        %v707 = vunpack.c.h.b16 %v398
        %v708 = vunpack.c.l.b16 %v399
        %v709 = vunpack.c.h.b16 %v399
        %v710 = vunpack.c.l.b16 %v400
        %v711 = vunpack.c.h.b16 %v400
        %v712 = vunpack.c.l.b16 %v401
        %v713 = vunpack.c.h.b16 %v401
        %v714 = vunpack.c.l.b16 %v402
        %v715 = vunpack.c.h.b16 %v402
        %v716 = vunpack.c.l.b16 %v403
        %v717 = vunpack.c.h.b16 %v403
        %v718 = vunpack.c.l.b16 %v404
        %v719 = vunpack.c.h.b16 %v404
        %v720 = vunpack.c.l.b16 %v405
        %v721 = vunpack.c.h.b16 %v405
        %v722 = vunpack.c.l.b16 %v406
        %v723 = vunpack.c.h.b16 %v406
        %v724 = vunpack.c.l.b16 %v407
        %v725 = vunpack.c.h.b16 %v407
        %v726 = vunpack.c.l.b16 %v408
        %v727 = vunpack.c.h.b16 %v408
        %v728 = vunpack.c.l.b16 %v409
        %v729 = vunpack.c.h.b16 %v409
        %v730 = vunpack.c.l.b16 %v410
        %v731 = vunpack.c.h.b16 %v410
        %v732 = vunpack.c.l.b16 %v411
        %v733 = vunpack.c.h.b16 %v411
        %v734 = vunpack.c.l.b16 %v412
        %v735 = vunpack.c.h.b16 %v412
        %v736 = vunpack.c.l.b16 %v413
        %v737 = vunpack.c.h.b16 %v413
        %v738 = vunpack.c.l.b16 %v414
        %v739 = vunpack.c.h.b16 %v414
        %v740 = vunpack.c.l.b16 %v415
        %v741 = vunpack.c.h.b16 %v415
        %v742 = vunpack.c.l.b16 %v416
        %v743 = vunpack.c.h.b16 %v416
        %v744 = vunpack.c.l.b16 %v417
        %v745 = vunpack.c.h.b16 %v417
        %v746 = vunpack.c.l.b16 %v418
        %v747 = vunpack.c.h.b16 %v418
        %v748 = vunpack.c.l.b16 %v419
        %v749 = vunpack.c.h.b16 %v419
        %v750 = vunpack.c.l.b16 %v420
        %v751 = vunpack.c.h.b16 %v420
        %v752 = vunpack.c.l.b16 %v421
        %v753 = vunpack.c.h.b16 %v421
        %v754 = vunpack.c.l.b16 %v422
        %v755 = vunpack.c.h.b16 %v422
        %v756 = vunpack.c.l.b16 %v423
        %v757 = vunpack.c.h.b16 %v423
        %v758 = vunpack.c.l.b16 %v424
        %v759 = vunpack.c.h.b16 %v424
        %v760 = vunpack.c.l.b16 %v425
        %v761 = vunpack.c.h.b16 %v425
        %v762 = vunpack.c.l.b16 %v426
        %v763 = vunpack.c.h.b16 %v426
        %v764 = vunpack.c.l.b16 %v427
        %v765 = vunpack.c.h.b16 %v427
        %v766 = vunpack.c.l.b16 %v428
        %v767 = vunpack.c.h.b16 %v428
        %v768 = vunpack.c.l.b16 %v429
        %v769 = vunpack.c.h.b16 %v429
        %v770 = vunpack.c.l.b16 %v430
        %v771 = vunpack.c.h.b16 %v430
        %v772 = vunpack.c.l.b16 %v431
        %v773 = vunpack.c.h.b16 %v431
        %v774 = vunpack.c.l.b16 %v432
        %v775 = vunpack.c.h.b16 %v432
        %v776 = vunpack.c.l.b16 %v433
        %v777 = vunpack.c.h.b16 %v433
        %v778 = vunpack.c.l.b16 %v434
        %v779 = vunpack.c.h.b16 %v434
        %v780 = vunpack.c.l.b16 %v435
        %v781 = vunpack.c.h.b16 %v435
        %v782 = vunpack.c.l.b16 %v436
        %v783 = vunpack.c.h.b16 %v436
        %v784 = vunpack.c.l.b16 %v437
        %v785 = vunpack.c.h.b16 %v437
        %v786 = vunpack.c.l.b16 %v438
        %v787 = vunpack.c.h.b16 %v438
        %v788 = vunpack.c.l.b16 %v439
        %v789 = vunpack.c.h.b16 %v439
        %v790 = vunpack.c.l.b16 %v440
        %v791 = vunpack.c.h.b16 %v440
        %v792 = vunpack.c.l.b16 %v441
        %v793 = vunpack.c.h.b16 %v441
        %v794 = vpack.c.b16 %v668, %v666
        %v795 = vpack.c.b16 %v669, %v667
        %v796 = vpack.c.b16 %v672, %v670
        %v797 = vpack.c.b16 %v673, %v671
        %v798 = vpack.c.b16 %v676, %v674
        %v799 = vpack.c.b16 %v677, %v675
        %v800 = vpack.c.b16 %v680, %v678
        %v801 = vpack.c.b16 %v681, %v679
        %v802 = vpack.c.b16 %v684, %v682
        %v803 = vpack.c.b16 %v685, %v683
        %v804 = vpack.c.b16 %v688, %v686
        %v805 = vpack.c.b16 %v689, %v687
        %v806 = vpack.c.b16 %v692, %v690
        %v807 = vpack.c.b16 %v693, %v691
        %v808 = vpack.c.b16 %v696, %v694
        %v809 = vpack.c.b16 %v697, %v695
        %v810 = vpack.c.b16 %v700, %v698
        %v811 = vpack.c.b16 %v701, %v699
        %v812 = vpack.c.b16 %v704, %v702
        %v813 = vpack.c.b16 %v705, %v703
        %v814 = vpack.c.b16 %v708, %v706
        %v815 = vpack.c.b16 %v709, %v707
        %v816 = vpack.c.b16 %v712, %v710
        %v817 = vpack.c.b16 %v713, %v711
        %v818 = vpack.c.b16 %v716, %v714
        %v819 = vpack.c.b16 %v717, %v715
        %v820 = vpack.c.b16 %v720, %v718
        %v821 = vpack.c.b16 %v721, %v719
        %v822 = vpack.c.b16 %v724, %v722
        %v823 = vpack.c.b16 %v725, %v723
        %v824 = vpack.c.b16 %v728, %v726
        %v825 = vpack.c.b16 %v729, %v727
        %v826 = vpack.c.b16 %v732, %v730
        %v827 = vpack.c.b16 %v733, %v731
        %v828 = vpack.c.b16 %v736, %v734
        %v829 = vpack.c.b16 %v737, %v735
        %v830 = vpack.c.b16 %v740, %v738
        %v831 = vpack.c.b16 %v741, %v739
        %v832 = vpack.c.b16 %v744, %v742
        %v833 = vpack.c.b16 %v745, %v743
        %v834 = vpack.c.b16 %v748, %v746
        %v835 = vpack.c.b16 %v749, %v747
        %v836 = vpack.c.b16 %v752, %v750
        %v837 = vpack.c.b16 %v753, %v751
        %v838 = vpack.c.b16 %v756, %v754
        %v839 = vpack.c.b16 %v757, %v755
        %v840 = vpack.c.b16 %v760, %v758
        %v841 = vpack.c.b16 %v761, %v759
        %v842 = vpack.c.b16 %v764, %v762
        %v843 = vpack.c.b16 %v765, %v763
        %v844 = vpack.c.b16 %v768, %v766
        %v845 = vpack.c.b16 %v769, %v767
        %v846 = vpack.c.b16 %v772, %v770
        %v847 = vpack.c.b16 %v773, %v771
        %v848 = vpack.c.b16 %v776, %v774
        %v849 = vpack.c.b16 %v777, %v775
        %v850 = vpack.c.b16 %v780, %v778
        %v851 = vpack.c.b16 %v781, %v779
        %v852 = vpack.c.b16 %v784, %v782
        %v853 = vpack.c.b16 %v785, %v783
        %v854 = vpack.c.b16 %v788, %v786
        %v855 = vpack.c.b16 %v789, %v787
        %v856 = vpack.c.b16 %v792, %v790
        %v857 = vpack.c.b16 %v793, %v791
        %922 = vmatprep.subr.bf16.mxu0 %v795
        %923 = vmatpush1.bf16.msra.mxu0 %v794
        %924 = vmatprep.subr.bf16.mxu0 %v797
        %925 = vmatpush1.bf16.msra.mxu0 %v796
        %926 = vmatprep.subr.bf16.mxu0 %v799
        %927 = vmatpush1.bf16.msra.mxu0 %v798
        %928 = vmatprep.subr.bf16.mxu0 %v801
        %929 = vmatpush1.bf16.msra.mxu0 %v800
        %930 = vmatprep.subr.bf16.mxu0 %v803
        %931 = vmatpush1.bf16.msra.mxu0 %v802
        %932 = vmatprep.subr.bf16.mxu0 %v805
        %933 = vmatpush1.bf16.msra.mxu0 %v804
        %934 = vmatprep.subr.bf16.mxu0 %v807
        %935 = vmatpush1.bf16.msra.mxu0 %v806
        %936 = vmatprep.subr.bf16.mxu0 %v809
        %937 = vmatpush1.bf16.msra.mxu0 %v808
        %938 = vmatprep.subr.bf16.mxu0 %v811
        %939 = vmatpush1.bf16.msra.mxu0 %v810
        %940 = vmatprep.subr.bf16.mxu0 %v813
        %941 = vmatpush1.bf16.msra.mxu0 %v812
        %942 = vmatprep.subr.bf16.mxu0 %v815
        %943 = vmatpush1.bf16.msra.mxu0 %v814
        %944 = vmatprep.subr.bf16.mxu0 %v817
        %945 = vmatpush1.bf16.msra.mxu0 %v816
        %946 = vmatprep.subr.bf16.mxu0 %v819
        %947 = vmatpush1.bf16.msra.mxu0 %v818
        %948 = vmatprep.subr.bf16.mxu0 %v821
        %949 = vmatpush1.bf16.msra.mxu0 %v820
        %950 = vmatprep.subr.bf16.mxu0 %v823
        %951 = vmatpush1.bf16.msra.mxu0 %v822
        %952 = vmatprep.subr.bf16.mxu0 %v825
        %953 = vmatpush1.bf16.msra.mxu0 %v824
        %954 = vmatprep.mubr.bf16.mxu0 %v539
        %955 = vmatmul.mubr.bf16.gmra.mrb[0].mxu0 %v538
        %v956 = vpop.f32.mrb[0].mxu0
        %v957 = vadd.f32 0.0, %v956
        %v958 = vpop.f32.mrb[0].mxu0
        %v959 = vadd.f32 0.0, %v958
        %v960 = vpop.f32.mrb[0].mxu0
        %v961 = vadd.f32 0.0, %v960
        %v962 = vpop.f32.mrb[0].mxu0
        %v963 = vadd.f32 0.0, %v962
        %964 = vmatprep.mubr.bf16.mxu0 %v543
        %965 = vmatmul.mubr.bf16.gmra.mrb[0].mxu0 %v542
        %v966 = vpop.f32.mrb[0].mxu0
        %v967 = vadd.f32 0.0, %v966
        %v968 = vpop.f32.mrb[0].mxu0
        %v969 = vadd.f32 0.0, %v968
        %v970 = vpop.f32.mrb[0].mxu0
        %v971 = vadd.f32 0.0, %v970
        %v972 = vpop.f32.mrb[0].mxu0
        %v973 = vadd.f32 0.0, %v972
        %974 = vmatprep.mubr.bf16.mxu0 %v547
        %975 = vmatmul.mubr.bf16.gmra.mrb[0].mxu0 %v546
        %v976 = vpop.f32.mrb[0].mxu0
        %v977 = vadd.f32 0.0, %v976
        %v978 = vpop.f32.mrb[0].mxu0
        %v979 = vadd.f32 0.0, %v978
        %v980 = vpop.f32.mrb[0].mxu0
        %v981 = vadd.f32 0.0, %v980
        %v982 = vpop.f32.mrb[0].mxu0
        %v983 = vadd.f32 0.0, %v982
        %984 = vmatprep.mubr.bf16.mxu0 %v551
        %985 = vmatmul.mubr.bf16.gmra.mrb[0].mxu0 %v550
        %v986 = vpop.f32.mrb[0].mxu0
        %v987 = vadd.f32 0.0, %v986
        %v988 = vpop.f32.mrb[0].mxu0
        %v989 = vadd.f32 0.0, %v988
        %v990 = vpop.f32.mrb[0].mxu0
        %v991 = vadd.f32 0.0, %v990
        %v992 = vpop.f32.mrb[0].mxu0
        %v993 = vadd.f32 0.0, %v992
        %994 = vmatprep.mubr.bf16.mxu0 %v555
        %995 = vmatmul.mubr.bf16.gmra.mrb[0].mxu0 %v554
        %v996 = vpop.f32.mrb[0].mxu0
        %v997 = vadd.f32 0.0, %v996
        %v998 = vpop.f32.mrb[0].mxu0
        %v999 = vadd.f32 0.0, %v998
        %v1000 = vpop.f32.mrb[0].mxu0
        %v1001 = vadd.f32 0.0, %v1000
        %v1002 = vpop.f32.mrb[0].mxu0
        %v1003 = vadd.f32 0.0, %v1002
        %1004 = vmatprep.mubr.bf16.mxu0 %v559
        %1005 = vmatmul.mubr.bf16.gmra.mrb[0].mxu0 %v558
        %v1006 = vpop.f32.mrb[0].mxu0
        %v1007 = vadd.f32 0.0, %v1006
        %v1008 = vpop.f32.mrb[0].mxu0
        %v1009 = vadd.f32 0.0, %v1008
        %v1010 = vpop.f32.mrb[0].mxu0
        %v1011 = vadd.f32 0.0, %v1010
        %v1012 = vpop.f32.mrb[0].mxu0
        %v1013 = vadd.f32 0.0, %v1012
        %1014 = vmatprep.mubr.bf16.mxu0 %v563
        %1015 = vmatmul.mubr.bf16.gmra.mrb[0].mxu0 %v562
        %v1016 = vpop.f32.mrb[0].mxu0
        %v1017 = vadd.f32 0.0, %v1016
        %v1018 = vpop.f32.mrb[0].mxu0
        %v1019 = vadd.f32 0.0, %v1018
        %v1020 = vpop.f32.mrb[0].mxu0
        %v1021 = vadd.f32 0.0, %v1020
        %v1022 = vpop.f32.mrb[0].mxu0
        %v1023 = vadd.f32 0.0, %v1022
        %1024 = vmatprep.mubr.bf16.mxu0 %v567
        %1025 = vmatmul.mubr.bf16.gmra.mrb[0].mxu0 %v566
        %v1026 = vpop.f32.mrb[0].mxu0
        %v1027 = vadd.f32 0.0, %v1026
        %v1028 = vpop.f32.mrb[0].mxu0
        %v1029 = vadd.f32 0.0, %v1028
        %v1030 = vpop.f32.mrb[0].mxu0
        %v1031 = vadd.f32 0.0, %v1030
        %v1032 = vpop.f32.mrb[0].mxu0
        %v1033 = vadd.f32 0.0, %v1032
        %1034 = vdwg.mxu0
        %1035 = vmatprep.subr.bf16.mxu0 %v827
        %1036 = vmatpush1.bf16.msra.mxu0 %v826
        %1037 = vmatprep.subr.bf16.mxu0 %v829
        %1038 = vmatpush1.bf16.msra.mxu0 %v828
        %1039 = vmatprep.subr.bf16.mxu0 %v831
        %1040 = vmatpush1.bf16.msra.mxu0 %v830
        %1041 = vmatprep.subr.bf16.mxu0 %v833
        %1042 = vmatpush1.bf16.msra.mxu0 %v832
        %1043 = vmatprep.subr.bf16.mxu0 %v835
        %1044 = vmatpush1.bf16.msra.mxu0 %v834
        %1045 = vmatprep.subr.bf16.mxu0 %v837
        %1046 = vmatpush1.bf16.msra.mxu0 %v836
        %1047 = vmatprep.subr.bf16.mxu0 %v839
        %1048 = vmatpush1.bf16.msra.mxu0 %v838
        %1049 = vmatprep.subr.bf16.mxu0 %v841
        %1050 = vmatpush1.bf16.msra.mxu0 %v840
        %1051 = vmatprep.subr.bf16.mxu0 %v843
        %1052 = vmatpush1.bf16.msra.mxu0 %v842
        %1053 = vmatprep.subr.bf16.mxu0 %v845
        %1054 = vmatpush1.bf16.msra.mxu0 %v844
        %1055 = vmatprep.subr.bf16.mxu0 %v847
        %1056 = vmatpush1.bf16.msra.mxu0 %v846
        %1057 = vmatprep.subr.bf16.mxu0 %v849
        %1058 = vmatpush1.bf16.msra.mxu0 %v848
        %1059 = vmatprep.subr.bf16.mxu0 %v851
        %1060 = vmatpush1.bf16.msra.mxu0 %v850
        %1061 = vmatprep.subr.bf16.mxu0 %v853
        %1062 = vmatpush1.bf16.msra.mxu0 %v852
        %1063 = vmatprep.subr.bf16.mxu0 %v855
        %1064 = vmatpush1.bf16.msra.mxu0 %v854
        %1065 = vmatprep.subr.bf16.mxu0 %v857
        %1066 = vmatpush1.bf16.msra.mxu0 %v856
        %1067 = vmatprep.mubr.bf16.mxu0 %v541
        %1068 = vmatmul.mubr.bf16.gmra.mrb[0].mxu0 %v540
        %v1069 = vpop.f32.mrb[0].mxu0
        %v1070 = vadd.f32 %v957, %v1069
        %v1071 = vpop.f32.mrb[0].mxu0
        %v1072 = vadd.f32 %v959, %v1071
        %v1073 = vpop.f32.mrb[0].mxu0
        %v1074 = vadd.f32 %v961, %v1073
        %v1075 = vpop.f32.mrb[0].mxu0
        %v1076 = vadd.f32 %v963, %v1075
        %1077 = vmatprep.mubr.bf16.mxu0 %v545
        %1078 = vmatmul.mubr.bf16.gmra.mrb[0].mxu0 %v544
        %v1079 = vpop.f32.mrb[0].mxu0
        %v1080 = vadd.f32 %v967, %v1079
        %v1081 = vpop.f32.mrb[0].mxu0
        %v1082 = vadd.f32 %v969, %v1081
        %v1083 = vpop.f32.mrb[0].mxu0
        %v1084 = vadd.f32 %v971, %v1083
        %v1085 = vpop.f32.mrb[0].mxu0
        %v1086 = vadd.f32 %v973, %v1085
        %1087 = vmatprep.mubr.bf16.mxu0 %v549
        %1088 = vmatmul.mubr.bf16.gmra.mrb[0].mxu0 %v548
        %v1089 = vpop.f32.mrb[0].mxu0
        %v1090 = vadd.f32 %v977, %v1089
        %v1091 = vpop.f32.mrb[0].mxu0
        %v1092 = vadd.f32 %v979, %v1091
        %v1093 = vpop.f32.mrb[0].mxu0
        %v1094 = vadd.f32 %v981, %v1093
        %v1095 = vpop.f32.mrb[0].mxu0
        %v1096 = vadd.f32 %v983, %v1095
        %1097 = vmatprep.mubr.bf16.mxu0 %v553
        %1098 = vmatmul.mubr.bf16.gmra.mrb[0].mxu0 %v552
        %v1099 = vpop.f32.mrb[0].mxu0
        %v1100 = vadd.f32 %v987, %v1099
        %v1101 = vpop.f32.mrb[0].mxu0
        %v1102 = vadd.f32 %v989, %v1101
        %v1103 = vpop.f32.mrb[0].mxu0
        %v1104 = vadd.f32 %v991, %v1103
        %v1105 = vpop.f32.mrb[0].mxu0
        %v1106 = vadd.f32 %v993, %v1105
        %1107 = vmatprep.mubr.bf16.mxu0 %v557
        %1108 = vmatmul.mubr.bf16.gmra.mrb[0].mxu0 %v556
        %v1109 = vpop.f32.mrb[0].mxu0
        %v1110 = vadd.f32 %v997, %v1109
        %v1111 = vpop.f32.mrb[0].mxu0
        %v1112 = vadd.f32 %v999, %v1111
        %v1113 = vpop.f32.mrb[0].mxu0
        %v1114 = vadd.f32 %v1001, %v1113
        %v1115 = vpop.f32.mrb[0].mxu0
        %v1116 = vadd.f32 %v1003, %v1115
        %1117 = vmatprep.mubr.bf16.mxu0 %v561
        %1118 = vmatmul.mubr.bf16.gmra.mrb[0].mxu0 %v560
        %v1119 = vpop.f32.mrb[0].mxu0
        %v1120 = vadd.f32 %v1007, %v1119
        %v1121 = vpop.f32.mrb[0].mxu0
        %v1122 = vadd.f32 %v1009, %v1121
        %v1123 = vpop.f32.mrb[0].mxu0
        %v1124 = vadd.f32 %v1011, %v1123
        %v1125 = vpop.f32.mrb[0].mxu0
        %v1126 = vadd.f32 %v1013, %v1125
        %1127 = vmatprep.mubr.bf16.mxu0 %v565
        %1128 = vmatmul.mubr.bf16.gmra.mrb[0].mxu0 %v564
        %v1129 = vpop.f32.mrb[0].mxu0
        %v1130 = vadd.f32 %v1017, %v1129
        %v1131 = vpop.f32.mrb[0].mxu0
        %v1132 = vadd.f32 %v1019, %v1131
        %v1133 = vpop.f32.mrb[0].mxu0
        %v1134 = vadd.f32 %v1021, %v1133
        %v1135 = vpop.f32.mrb[0].mxu0
        %v1136 = vadd.f32 %v1023, %v1135
        %1137 = vmatprep.mubr.bf16.mxu0 %v569
        %1138 = vmatmul.mubr.bf16.gmra.mrb[0].mxu0 %v568
        %v1139 = vpop.f32.mrb[0].mxu0
        %v1140 = vadd.f32 %v1027, %v1139
        %v1141 = vpop.f32.mrb[0].mxu0
        %v1142 = vadd.f32 %v1029, %v1141
        %v1143 = vpop.f32.mrb[0].mxu0
        %v1144 = vadd.f32 %v1031, %v1143
        %v1145 = vpop.f32.mrb[0].mxu0
        %v1146 = vadd.f32 %v1033, %v1145
        %1147 = vdwg.mxu0
        %v1148 = vadd.f32 %v314, %v1070
        %v1149 = vadd.f32 %v315, %v1072
        %v1150 = vadd.f32 %v316, %v1074
        %v1151 = vadd.f32 %v317, %v1076
        %v1152 = vadd.f32 %v318, %v1080
        %v1153 = vadd.f32 %v319, %v1082
        %v1154 = vadd.f32 %v320, %v1084
        %v1155 = vadd.f32 %v321, %v1086
        %v1156 = vadd.f32 %v322, %v1090
        %v1157 = vadd.f32 %v323, %v1092
        %v1158 = vadd.f32 %v324, %v1094
        %v1159 = vadd.f32 %v325, %v1096
        %v1160 = vadd.f32 %v326, %v1100
        %v1161 = vadd.f32 %v327, %v1102
        %v1162 = vadd.f32 %v328, %v1104
        %v1163 = vadd.f32 %v329, %v1106
        %v1164 = vadd.f32 %v330, %v1110
        %v1165 = vadd.f32 %v331, %v1112
        %v1166 = vadd.f32 %v332, %v1114
        %v1167 = vadd.f32 %v333, %v1116
        %v1168 = vadd.f32 %v334, %v1120
        %v1169 = vadd.f32 %v335, %v1122
        %v1170 = vadd.f32 %v336, %v1124
        %v1171 = vadd.f32 %v337, %v1126
        %v1172 = vadd.f32 %v338, %v1130
        %v1173 = vadd.f32 %v339, %v1132
        %v1174 = vadd.f32 %v340, %v1134
        %v1175 = vadd.f32 %v341, %v1136
        %v1176 = vadd.f32 %v342, %v1140
        %v1177 = vadd.f32 %v343, %v1142
        %v1178 = vadd.f32 %v344, %v1144
        %v1179 = vadd.f32 %v345, %v1146
        %1180 = vst [vmem:[#allocation2] sm:$0xff] %v1148
        %1181 = vst [vmem:[#allocation2 + $0x8] sm:$0xff] %v1149
        %1182 = vst [vmem:[#allocation2 + $0x10] sm:$0xff] %v1150
        %1183 = vst [vmem:[#allocation2 + $0x18] sm:$0xff] %v1151
        %1184 = vst [vmem:[#allocation2 + $0x20] sm:$0xff] %v1152
        %1185 = vst [vmem:[#allocation2 + $0x28] sm:$0xff] %v1153
        %1186 = vst [vmem:[#allocation2 + $0x30] sm:$0xff] %v1154
        %1187 = vst [vmem:[#allocation2 + $0x38] sm:$0xff] %v1155
        %1188 = vst [vmem:[#allocation2 + $0x40] sm:$0xff] %v1156
        %1189 = vst [vmem:[#allocation2 + $0x48] sm:$0xff] %v1157
        %1190 = vst [vmem:[#allocation2 + $0x50] sm:$0xff] %v1158
        %1191 = vst [vmem:[#allocation2 + $0x58] sm:$0xff] %v1159
        %1192 = vst [vmem:[#allocation2 + $0x60] sm:$0xff] %v1160
        %1193 = vst [vmem:[#allocation2 + $0x68] sm:$0xff] %v1161
        %1194 = vst [vmem:[#allocation2 + $0x70] sm:$0xff] %v1162
        %1195 = vst [vmem:[#allocation2 + $0x78] sm:$0xff] %v1163
        %1196 = vst [vmem:[#allocation2 + $0x80] sm:$0xff] %v1164
        %1197 = vst [vmem:[#allocation2 + $0x88] sm:$0xff] %v1165
        %1198 = vst [vmem:[#allocation2 + $0x90] sm:$0xff] %v1166
        %1199 = vst [vmem:[#allocation2 + $0x98] sm:$0xff] %v1167
        %1200 = vst [vmem:[#allocation2 + $0xa0] sm:$0xff] %v1168
        %1201 = vst [vmem:[#allocation2 + $0xa8] sm:$0xff] %v1169
        %1202 = vst [vmem:[#allocation2 + $0xb0] sm:$0xff] %v1170
        %1203 = vst [vmem:[#allocation2 + $0xb8] sm:$0xff] %v1171
        %1204 = vst [vmem:[#allocation2 + $0xc0] sm:$0xff] %v1172
        %1205 = vst [vmem:[#allocation2 + $0xc8] sm:$0xff] %v1173
        %1206 = vst [vmem:[#allocation2 + $0xd0] sm:$0xff] %v1174
        %1207 = vst [vmem:[#allocation2 + $0xd8] sm:$0xff] %v1175
        %1208 = vst [vmem:[#allocation2 + $0xe0] sm:$0xff] %v1176
        %1209 = vst [vmem:[#allocation2 + $0xe8] sm:$0xff] %v1177
        %1210 = vst [vmem:[#allocation2 + $0xf0] sm:$0xff] %v1178
        %1211 = vst [vmem:[#allocation2 + $0xf8] sm:$0xff] %v1179
        %p1212 = scmp.eq.s32.totalorder %s28, 1
        // Predicated region
        $region45: #{tpu_custom_call.1} parent=31 // pred_check
          %p1213 = pneg %p1212
        $region46: #{tpu_custom_call.1} parent=31 // pred_check_branch
          %1215 = sbr.rel (%p1213) target = $region48
        $region47: #{tpu_custom_call.1} parent=31 // pred_region
          %v1216 = vld [vmem:[#allocation2] sm:$0xff]
          %v1217 = vld [vmem:[#allocation2 + $0x8] sm:$0xff]
          %v1218 = vld [vmem:[#allocation2 + $0x10] sm:$0xff]
          %v1219 = vld [vmem:[#allocation2 + $0x18] sm:$0xff]
          %v1220 = vld [vmem:[#allocation2 + $0x20] sm:$0xff]
          %v1221 = vld [vmem:[#allocation2 + $0x28] sm:$0xff]
          %v1222 = vld [vmem:[#allocation2 + $0x30] sm:$0xff]
          %v1223 = vld [vmem:[#allocation2 + $0x38] sm:$0xff]
          %v1224 = vld [vmem:[#allocation2 + $0x40] sm:$0xff]
          %v1225 = vld [vmem:[#allocation2 + $0x48] sm:$0xff]
          %v1226 = vld [vmem:[#allocation2 + $0x50] sm:$0xff]
          %v1227 = vld [vmem:[#allocation2 + $0x58] sm:$0xff]
          %v1228 = vld [vmem:[#allocation2 + $0x60] sm:$0xff]
          %v1229 = vld [vmem:[#allocation2 + $0x68] sm:$0xff]
          %v1230 = vld [vmem:[#allocation2 + $0x70] sm:$0xff]
          %v1231 = vld [vmem:[#allocation2 + $0x78] sm:$0xff]
          %v1232 = vld [vmem:[#allocation2 + $0x80] sm:$0xff]
          %v1233 = vld [vmem:[#allocation2 + $0x88] sm:$0xff]
          %v1234 = vld [vmem:[#allocation2 + $0x90] sm:$0xff]
          %v1235 = vld [vmem:[#allocation2 + $0x98] sm:$0xff]
          %v1236 = vld [vmem:[#allocation2 + $0xa0] sm:$0xff]
          %v1237 = vld [vmem:[#allocation2 + $0xa8] sm:$0xff]
          %v1238 = vld [vmem:[#allocation2 + $0xb0] sm:$0xff]
          %v1239 = vld [vmem:[#allocation2 + $0xb8] sm:$0xff]
          %v1240 = vld [vmem:[#allocation2 + $0xc0] sm:$0xff]
          %v1241 = vld [vmem:[#allocation2 + $0xc8] sm:$0xff]
          %v1242 = vld [vmem:[#allocation2 + $0xd0] sm:$0xff]
          %v1243 = vld [vmem:[#allocation2 + $0xd8] sm:$0xff]
          %v1244 = vld [vmem:[#allocation2 + $0xe0] sm:$0xff]
          %v1245 = vld [vmem:[#allocation2 + $0xe8] sm:$0xff]
          %v1246 = vld [vmem:[#allocation2 + $0xf0] sm:$0xff]
          %v1247 = vld [vmem:[#allocation2 + $0xf8] sm:$0xff]
          %v1248 = vld [vmem:[%s274] sm:$0x3]
          %v1250 = vlaneseq
          %v1251 = vshrl.u32 %v1250, 7
          %v1252 = vsub.s32 0, %v1251
          %v1253 = vrot.slane %v1248, %v1252
          %v1254 = vlaneseq
          %v1255 = vshrl.u32 %v1254, 7
          %v1256 = vsub.s32 1, %v1255
          %v1257 = vrot.slane %v1248, %v1256
          %v1260 = vadd.f32 %v1216, %v1253
          %v1261 = vadd.f32 %v1217, %v1257
          %v1262 = vadd.f32 %v1218, %v1253
          %v1263 = vadd.f32 %v1219, %v1257
          %v1264 = vadd.f32 %v1220, %v1253
          %v1265 = vadd.f32 %v1221, %v1257
          %v1266 = vadd.f32 %v1222, %v1253
          %v1267 = vadd.f32 %v1223, %v1257
          %v1268 = vadd.f32 %v1224, %v1253
          %v1269 = vadd.f32 %v1225, %v1257
          %v1270 = vadd.f32 %v1226, %v1253
          %v1271 = vadd.f32 %v1227, %v1257
          %v1272 = vadd.f32 %v1228, %v1253
          %v1273 = vadd.f32 %v1229, %v1257
          %v1274 = vadd.f32 %v1230, %v1253
          %v1275 = vadd.f32 %v1231, %v1257
          %v1276 = vadd.f32 %v1232, %v1253
          %v1277 = vadd.f32 %v1233, %v1257
          %v1278 = vadd.f32 %v1234, %v1253
          %v1279 = vadd.f32 %v1235, %v1257
          %v1280 = vadd.f32 %v1236, %v1253
          %v1281 = vadd.f32 %v1237, %v1257
          %v1282 = vadd.f32 %v1238, %v1253
          %v1283 = vadd.f32 %v1239, %v1257
          %v1284 = vadd.f32 %v1240, %v1253
          %v1285 = vadd.f32 %v1241, %v1257
          %v1286 = vadd.f32 %v1242, %v1253
          %v1287 = vadd.f32 %v1243, %v1257
          %v1288 = vadd.f32 %v1244, %v1253
          %v1289 = vadd.f32 %v1245, %v1257
          %v1290 = vadd.f32 %v1246, %v1253
          %v1291 = vadd.f32 %v1247, %v1257
          %1292 = vst [vmem:[#allocation8] sm:$0xff] %v1260
          %1293 = vst [vmem:[#allocation8 + $0x8] sm:$0xff] %v1261
          %1294 = vst [vmem:[#allocation8 + $0x10] sm:$0xff] %v1262
          %1295 = vst [vmem:[#allocation8 + $0x18] sm:$0xff] %v1263
          %1296 = vst [vmem:[#allocation8 + $0x20] sm:$0xff] %v1264
          %1297 = vst [vmem:[#allocation8 + $0x28] sm:$0xff] %v1265
          %1298 = vst [vmem:[#allocation8 + $0x30] sm:$0xff] %v1266
          %1299 = vst [vmem:[#allocation8 + $0x38] sm:$0xff] %v1267
          %1300 = vst [vmem:[#allocation8 + $0x40] sm:$0xff] %v1268
          %1301 = vst [vmem:[#allocation8 + $0x48] sm:$0xff] %v1269
          %1302 = vst [vmem:[#allocation8 + $0x50] sm:$0xff] %v1270
          %1303 = vst [vmem:[#allocation8 + $0x58] sm:$0xff] %v1271
          %1304 = vst [vmem:[#allocation8 + $0x60] sm:$0xff] %v1272
          %1305 = vst [vmem:[#allocation8 + $0x68] sm:$0xff] %v1273
          %1306 = vst [vmem:[#allocation8 + $0x70] sm:$0xff] %v1274
          %1307 = vst [vmem:[#allocation8 + $0x78] sm:$0xff] %v1275
          %1308 = vst [vmem:[#allocation8 + $0x80] sm:$0xff] %v1276
          %1309 = vst [vmem:[#allocation8 + $0x88] sm:$0xff] %v1277
          %1310 = vst [vmem:[#allocation8 + $0x90] sm:$0xff] %v1278
          %1311 = vst [vmem:[#allocation8 + $0x98] sm:$0xff] %v1279
          %1312 = vst [vmem:[#allocation8 + $0xa0] sm:$0xff] %v1280
          %1313 = vst [vmem:[#allocation8 + $0xa8] sm:$0xff] %v1281
          %1314 = vst [vmem:[#allocation8 + $0xb0] sm:$0xff] %v1282
          %1315 = vst [vmem:[#allocation8 + $0xb8] sm:$0xff] %v1283
          %1316 = vst [vmem:[#allocation8 + $0xc0] sm:$0xff] %v1284
          %1317 = vst [vmem:[#allocation8 + $0xc8] sm:$0xff] %v1285
          %1318 = vst [vmem:[#allocation8 + $0xd0] sm:$0xff] %v1286
          %1319 = vst [vmem:[#allocation8 + $0xd8] sm:$0xff] %v1287
          %1320 = vst [vmem:[#allocation8 + $0xe0] sm:$0xff] %v1288
          %1321 = vst [vmem:[#allocation8 + $0xe8] sm:$0xff] %v1289
          %1322 = vst [vmem:[#allocation8 + $0xf0] sm:$0xff] %v1290
          %1323 = vst [vmem:[#allocation8 + $0xf8] sm:$0xff] %v1291
        $region48: #{tpu_custom_call.1} parent=31 // pred_fallthru
          _
        // Predicated region
        $region49: #{tpu_custom_call.1} parent=31 // pred_check
          %p1324 = pneg %p142
        $region50: #{tpu_custom_call.1} parent=31 // pred_check_branch
          %1326 = sbr.rel (%p1324) target = $region52
        $region51: #{tpu_custom_call.1} parent=31 // pred_region
          %s1327 = smul.u32 16, %s26
          %s1328 = smul.u32 2, %s27
          %s1330 = ssub.s32 4096, 4096
          %1331 = vsyncadd [#allocation5], %s1330
          %s1332 = smul.addr %s1327, 2
          %s1333 = sadd.s32 %s1328, %s1332
          %s1334 = smul.addr %s1333, 128
          %s1335 = scalar_lea.hbm %s3, %s1334
          %s1336 = sshll.u32 [#allocation8], 4
          %s1337 = int_to_ptr.vmem [resolvable:$true] %s1336
          %1342 = dma.vmem_to_hbm [thread:$0]  %s1337, 4096, %s1335, [#allocation5], 256, 256, 16
        $region52: #{tpu_custom_call.1} parent=31 // pred_fallthru
          _
        // Predicated region
        $region53: #{tpu_custom_call.1} parent=31 // pred_check
          %p1343 = pneg %p142
        $region54: #{tpu_custom_call.1} parent=31 // pred_check_branch
          %1345 = sbr.rel (%p1343) target = $region56
        $region55: #{tpu_custom_call.1} parent=31 // pred_region
          %1346 = dma.done [#allocation5], 4096
        $region56: #{tpu_custom_call.1} parent=31 // pred_fallthru
          _
      $region32: #{tpu_custom_call.1} parent=5 // pred_fallthru
        _
      %p1347 = scmp.le.s32.totalorder 2, %s16
      // Predicated region
      $region57: #{tpu_custom_call.1} parent=5 // pred_check
        %p1348 = pneg %p1347
      $region58: #{tpu_custom_call.1} parent=5 // pred_check_branch
        %1350 = sbr.rel (%p1348) target = $region60
      $region59: #{tpu_custom_call.1} parent=5 // pred_region
        %s1351 = ssub.s32 %s16, 2
      $region60: #{tpu_custom_call.1} parent=5 // pred_fallthru
        _
    $region6: #{tpu_custom_call.1} parent=1 // loop_footer
      %s20 = sadd.s32 1, %s16
    $region7: #{tpu_custom_call.1} parent=1 // loop_footer_branch
      %15 = sbr.rel target = $region3
    $region8: #{tpu_custom_call.1} parent=1 // loop_exit
      _
    %1352 = vsyncpa [#allocation4], 1
    %s1353 = scalar_lea.sflag [#allocation4], 1
    %1354 = vsyncpa %s1353, 1
    %1355 = vsyncpa [#allocation7], 1
    %s1356 = scalar_lea.sflag [#allocation7], 1
    %1357 = vsyncpa %s1356, 1
    %1358 = vsyncpa [#allocation5], 1
    %s1359 = scalar_lea.sflag [#allocation5], 1
    %1360 = vsyncpa %s1359, 1

</llo_original>
